<compile_context>
chip_gen: v6e
topology: v6e:2x2x1
jax: 0.10.0
libtpu: 0.0.40
codegen_flags: <defaults>
</compile_context>

<pallas_src>
import math

import jax
import jax.numpy as jnp
from jax.experimental import pallas as pl
from jax.experimental.pallas import tpu as pltpu

_LANE = 128
_SUBLANE = 8
_TILE_VMEM_BUDGET = 40 * 1024 * 1024   # cap for double-buffered E tiles (v7x-safe)
_VMEM_LIMIT_FLOOR = 16 * 1024 * 1024
_VMEM_LIMIT_CAP = 56 * 1024 * 1024     # leave headroom under v7x's 64 MiB / TC


def _round_up(x, m):
    return ((x + m - 1) // m) * m


def prepare_params(weight, bias):
    """One-time parameter prep (hoisted out of the per-call hot path).

    weight: (Fout, Fin) PyTorch nn.Linear convention; bias: (Fout,).
    Returns (wt_padded (Fin, Fp), bias2d (1, Fout)), Fp = round_up(Fout, 128).
    The Fp zero-pad only feeds the MXU N dimension; the kernel writes true Fout.
    """
    f32 = jnp.float32
    Fout, Fin = weight.shape
    Fp = _round_up(Fout, _LANE)
    wt = jnp.transpose(weight).astype(f32)          # (Fin, Fout) -> no in-kernel .T
    if Fp != Fout:
        wt = jnp.pad(wt, ((0, 0), (0, Fp - Fout)))
    bias2d = bias.astype(f32).reshape(1, Fout)
    return wt, bias2d


def _fused_kernel(adj_ref, x_ref, wt_ref, b_ref, out_ref):
    # Projection (R, Fin) @ (Fin, Fp): recomputed per E-tile -- cheap MXU filler
    # (kernel is HBM-writeback bound) and keeps the E axis megacore-safe.
    xw = jnp.dot(x_ref[...], wt_ref[...], preferred_element_type=jnp.float32)
    h = jnp.dot(adj_ref[...], xw, preferred_element_type=jnp.float32)   # (te, Fp)
    fout = out_ref.shape[-1]
    out_ref[...] = (h[:, :fout] + b_ref[...]).astype(out_ref.dtype)


def _build_edge_call(E, R, Fin, Fp, Fout, te, vmem_limit, single_buffer_invariants):
    grid_e = pl.cdiv(E, te)
    inv_kw = {"pipeline_mode": pl.Buffered(1)} if single_buffer_invariants else {}
    return pl.pallas_call(
        _fused_kernel,
        out_shape=jax.ShapeDtypeStruct((E, Fout), jnp.float32),
        grid_spec=pltpu.PrefetchScalarGridSpec(
            num_scalar_prefetch=0,
            grid=(grid_e,),
            in_specs=[
                pl.BlockSpec((te, R), lambda i: (i, 0)),              # adjacency tile
                pl.BlockSpec((R, Fin), lambda i: (0, 0), **inv_kw),   # resource_embedding
                pl.BlockSpec((Fin, Fp), lambda i: (0, 0), **inv_kw),  # W^T (MXU-padded)
                pl.BlockSpec((1, Fout), lambda i: (0, 0), **inv_kw),  # bias
            ],
            out_specs=pl.BlockSpec((te, Fout), lambda i: (i, 0)),
        ),
        compiler_params=pltpu.CompilerParams(
            dimension_semantics=("parallel",),        # megacore sharding on v7x
            vmem_limit_bytes=vmem_limit),
        cost_estimate=pl.CostEstimate(
            flops=2 * E * R * Fp + 2 * grid_e * R * Fin * Fp + E * Fout,
            transcendentals=0,
            bytes_accessed=4 * (E * R + R * Fin + Fin * Fp + Fout + E * Fout)),
    )


def resource_to_edge_conv(adjacency, resource_embedding, wt_padded, bias2d, *, block_e=1024):
    """(adjacency @ (resource_embedding @ W^T)) + bias, fused in one Pallas call."""
    f32 = jnp.float32
    E, R = adjacency.shape
    R2, Fin = resource_embedding.shape
    Fin2, Fp = wt_padded.shape
    Fout = bias2d.shape[-1]
    assert R == R2 and Fin == Fin2 and Fp == _round_up(Fout, _LANE)

    adjacency = adjacency.astype(f32)
    resource_embedding = resource_embedding.astype(f32)

    # E tile: big enough to amortize ~0.35us/grid-step, but >= 2 tiles so the
    # "parallel" axis actually shards across both v7x TensorCores, and capped so
    # the double-buffered adjacency/output tiles stay in a v7x-safe VMEM budget.
    te = min(block_e, _round_up(pl.cdiv(E, 2), _SUBLANE))
    row_bytes = 2 * 4 * (R + Fout)                      # double-buffered adj+out row (f32)
    te_cap = max(_SUBLANE, (_TILE_VMEM_BUDGET // row_bytes) // _SUBLANE * _SUBLANE)
    te = max(_SUBLANE, min(te, te_cap))

    # Derived VMEM request (tiles + resident operands + intermediates) with margin,
    # floored at 16 MiB and capped below v7x's 64 MiB per-TC VMEM.
    need = 4 * (2 * te * R + 2 * te * Fout              # double-buffered E tiles
                + 2 * (R * Fin + Fin * Fp + Fout)       # resident operands (<= 2 bufs)
                + te * Fp + R * Fp)                     # in-kernel h / xw temporaries
    vmem_limit = int(min(max(2 * need, _VMEM_LIMIT_FLOOR), _VMEM_LIMIT_CAP))

    # TODO(synk): for production-scale R (or Fin), add an R grid axis with an f32
    # accumulator scratch (pl.when init at k==0, bias-add/store at k==last) instead
    # of keeping the full (te, R) adjacency slab and (Fin, Fp) weight resident.
    args = (adjacency, resource_embedding, wt_padded, bias2d)
    try:
        # Grid-invariant operands single-buffered (halves their resident footprint).
        return _build_edge_call(E, R, Fin, Fp, Fout, te, vmem_limit, True)(*args)
    except Exception:
        # Fallback: default double-buffering if pl.Buffered(1) is not supported here.
        return _build_edge_call(E, R, Fin, Fp, Fout, te, vmem_limit, False)(*args)


def _reference(adjacency, resource_embedding, weight, bias):
    x = resource_embedding @ weight.T
    h = adjacency @ x
    return h + bias[None, :]


if __name__ == "__main__":
    # Small, module-consistent shapes.
    num_edges = 16       # rows of adjacency
    num_resources = 8    # cols of adjacency == rows of resource_embedding
    in_features = 32
    out_features = 32

    key = jax.random.PRNGKey(0)
    k_adj, k_x, k_w, k_b = jax.random.split(key, 4)

    adjacency = jax.random.uniform(k_adj, (num_edges, num_resources), jnp.float32)
    resource_embedding = jax.random.normal(k_x, (num_resources, in_features), jnp.float32)

    # Deterministic parameter init mirroring the module's __init__:
    #   fc = nn.Linear(in, out, bias=False) -> weight (out, in)
    #   bias = Parameter(out) -> uniform(-stdv, stdv), stdv = 1/sqrt(in)
    stdv = 1.0 / math.sqrt(in_features)
    weight = jax.random.uniform(
        k_w, (out_features, in_features), jnp.float32, minval=-stdv, maxval=stdv)
    bias = jax.random.uniform(
        k_b, (out_features,), jnp.float32, minval=-stdv, maxval=stdv)

    # Parameter prep (transpose / MXU pad / reshape) hoisted out of the hot path.
    wt_padded, bias2d = prepare_params(weight, bias)

    out = resource_to_edge_conv(adjacency, resource_embedding, wt_padded, bias2d)
    out = jax.block_until_ready(out)

    ref = _reference(adjacency, resource_embedding, weight, bias)
    assert out.shape == (num_edges, out_features)
    assert jnp.allclose(out, ref, atol=1e-4, rtol=1e-4), "mismatch vs reference"

    print("KERNEL_OK")
</pallas_src>

<mosaic_0001>
module attributes {stable_mosaic.version = 11 : i64} {
  func.func @_fused_kernel(%arg0: i32, %arg1: memref<8x8xf32, #tpu.memory_space<vmem>>, %arg2: memref<8x32xf32, #tpu.memory_space<vmem>>, %arg3: memref<32x128xf32, #tpu.memory_space<vmem>>, %arg4: memref<1x32xf32, #tpu.memory_space<vmem>>, %arg5: memref<8x32xf32, #tpu.memory_space<vmem>>) attributes {dimension_semantics = [#tpu.dimension_semantics<parallel>], iteration_bounds = array<i64: 2>, scalar_prefetch = 0 : i64, scratch_operands = 0 : i64, tpu.core_type = #tpu.core_type<tc>, window_params = [{transform_indices = @transform_0, window_bounds = array<i64: 8, 8>}, {pipeline_mode = #tpu.pipeline_mode<synchronous>, transform_indices = @transform_1, window_bounds = array<i64: 8, 32>}, {pipeline_mode = #tpu.pipeline_mode<synchronous>, transform_indices = @transform_2, window_bounds = array<i64: 32, 128>}, {pipeline_mode = #tpu.pipeline_mode<synchronous>, transform_indices = @transform_3, window_bounds = array<i64: 1, 32>}, {transform_indices = @transform_4, window_bounds = array<i64: 8, 32>}]} {
    %c0 = arith.constant 0 : index
    %c0_0 = arith.constant 0 : index
    %0 = vector.load %arg2[%c0, %c0_0] : memref<8x32xf32, #tpu.memory_space<vmem>>, vector<8x32xf32>
    %c0_1 = arith.constant 0 : index
    %c0_2 = arith.constant 0 : index
    %1 = vector.load %arg3[%c0_1, %c0_2] : memref<32x128xf32, #tpu.memory_space<vmem>>, vector<32x128xf32>
    %cst = arith.constant dense<0.000000e+00> : vector<8x128xf32>
    %2 = tpu.matmul %0, %1, %cst {dimension_numbers = #tpu.dot_dimension_numbers<[1], [0], [0], [1], [0, 0, 1, 1], [], []>} : vector<8x32xf32>, vector<32x128xf32>, vector<8x128xf32> -> vector<8x128xf32>
    %c0_3 = arith.constant 0 : index
    %c0_4 = arith.constant 0 : index
    %3 = vector.load %arg1[%c0_3, %c0_4] : memref<8x8xf32, #tpu.memory_space<vmem>>, vector<8x8xf32>
    %cst_5 = arith.constant dense<0.000000e+00> : vector<8x128xf32>
    %4 = tpu.matmul %3, %2, %cst_5 {dimension_numbers = #tpu.dot_dimension_numbers<[1], [0], [0], [1], [0, 0, 1, 1], [], []>} : vector<8x8xf32>, vector<8x128xf32>, vector<8x128xf32> -> vector<8x128xf32>
    %5 = vector.extract_strided_slice %4 {offsets = [0, 0], sizes = [8, 32], strides = [1, 1]} : vector<8x128xf32> to vector<8x32xf32>
    %c0_6 = arith.constant 0 : index
    %c0_7 = arith.constant 0 : index
    %6 = vector.load %arg4[%c0_6, %c0_7] : memref<1x32xf32, #tpu.memory_space<vmem>>, vector<1x32xf32>
    %7 = vector.broadcast %6 : vector<1x32xf32> to vector<8x32xf32>
    %8 = arith.addf %5, %7 : vector<8x32xf32>
    %c0_8 = arith.constant 0 : index
    %c0_9 = arith.constant 0 : index
    %9 = vector.load %arg5[%c0_8, %c0_9] : memref<8x32xf32, #tpu.memory_space<vmem>>, vector<8x32xf32>
    tpu.vector_store %arg5[%c0_8, %c0_9], %8 {strides = array<i32>} : memref<8x32xf32, #tpu.memory_space<vmem>>, vector<8x32xf32>,
    return
  }
  func.func @transform_0(%arg0: i32) -> (i32, i32) {
    %c0_i32 = arith.constant 0 : i32
    %c0_i32_0 = arith.constant 0 : i32
    return %arg0, %c0_i32 : i32, i32
  }
  func.func @transform_1(%arg0: i32) -> (i32, i32) {
    %c0_i32 = arith.constant 0 : i32
    %c0_i32_0 = arith.constant 0 : i32
    %c0_i32_1 = arith.constant 0 : i32
    return %c0_i32, %c0_i32_0 : i32, i32
  }
  func.func @transform_2(%arg0: i32) -> (i32, i32) {
    %c0_i32 = arith.constant 0 : i32
    %c0_i32_0 = arith.constant 0 : i32
    %c0_i32_1 = arith.constant 0 : i32
    return %c0_i32, %c0_i32_0 : i32, i32
  }
  func.func @transform_3(%arg0: i32) -> (i32, i32) {
    %c0_i32 = arith.constant 0 : i32
    %c0_i32_0 = arith.constant 0 : i32
    %c0_i32_1 = arith.constant 0 : i32
    return %c0_i32, %c0_i32_0 : i32, i32
  }
  func.func @transform_4(%arg0: i32) -> (i32, i32) {
    %c0_i32 = arith.constant 0 : i32
    %c0_i32_0 = arith.constant 0 : i32
    return %arg0, %c0_i32 : i32, i32
  }
}

module attributes {stable_mosaic.version = 11 : i64} {
  func.func @_fused_kernel(%arg0: i32, %arg1: memref<8x8xf32, #tpu.memory_space<vmem>>, %arg2: memref<8x32xf32, #tpu.memory_space<vmem>>, %arg3: memref<32x128xf32, #tpu.memory_space<vmem>>, %arg4: memref<1x32xf32, #tpu.memory_space<vmem>>, %arg5: memref<8x32xf32, #tpu.memory_space<vmem>>) attributes {dimension_semantics = [#tpu.dimension_semantics<parallel>], iteration_bounds = array<i64: 2>, scalar_prefetch = 0 : i64, scratch_operands = 0 : i64, tpu.core_type = #tpu.core_type<tc>, window_params = [{transform_indices = @transform_0, window_bounds = array<i64: 8, 8>}, {pipeline_mode = #tpu.pipeline_mode<synchronous>, transform_indices = @transform_1, window_bounds = array<i64: 8, 32>}, {pipeline_mode = #tpu.pipeline_mode<synchronous>, transform_indices = @transform_2, window_bounds = array<i64: 32, 128>}, {pipeline_mode = #tpu.pipeline_mode<synchronous>, transform_indices = @transform_3, window_bounds = array<i64: 1, 32>}, {transform_indices = @transform_4, window_bounds = array<i64: 8, 32>}]} {
    %c0 = arith.constant 0 : index
    %c0_0 = arith.constant 0 : index
    %0 = vector.load %arg2[%c0, %c0_0] : memref<8x32xf32, #tpu.memory_space<vmem>>, vector<8x32xf32>
    %c0_1 = arith.constant 0 : index
    %c0_2 = arith.constant 0 : index
    %1 = vector.load %arg3[%c0_1, %c0_2] : memref<32x128xf32, #tpu.memory_space<vmem>>, vector<32x128xf32>
    %cst = arith.constant dense<0.000000e+00> : vector<8x128xf32>
    %2 = tpu.matmul %0, %1, %cst {dimension_numbers = #tpu.dot_dimension_numbers<[1], [0], [0], [1], [0, 0, 1, 1], [], []>} : vector<8x32xf32>, vector<32x128xf32>, vector<8x128xf32> -> vector<8x128xf32>
    %c0_3 = arith.constant 0 : index
    %c0_4 = arith.constant 0 : index
    %3 = vector.load %arg1[%c0_3, %c0_4] : memref<8x8xf32, #tpu.memory_space<vmem>>, vector<8x8xf32>
    %cst_5 = arith.constant dense<0.000000e+00> : vector<8x128xf32>
    %4 = tpu.matmul %3, %2, %cst_5 {dimension_numbers = #tpu.dot_dimension_numbers<[1], [0], [0], [1], [0, 0, 1, 1], [], []>} : vector<8x8xf32>, vector<8x128xf32>, vector<8x128xf32> -> vector<8x128xf32>
    %5 = vector.extract_strided_slice %4 {offsets = [0, 0], sizes = [8, 32], strides = [1, 1]} : vector<8x128xf32> to vector<8x32xf32>
    %c0_6 = arith.constant 0 : index
    %c0_7 = arith.constant 0 : index
    %6 = vector.load %arg4[%c0_6, %c0_7] : memref<1x32xf32, #tpu.memory_space<vmem>>, vector<1x32xf32>
    %7 = vector.broadcast %6 : vector<1x32xf32> to vector<8x32xf32>
    %8 = arith.addf %5, %7 : vector<8x32xf32>
    %c0_8 = arith.constant 0 : index
    %c0_9 = arith.constant 0 : index
    %9 = vector.load %arg5[%c0_8, %c0_9] : memref<8x32xf32, #tpu.memory_space<vmem>>, vector<8x32xf32>
    tpu.vector_store %arg5[%c0_8, %c0_9], %8 {strides = array<i32>} : memref<8x32xf32, #tpu.memory_space<vmem>>, vector<8x32xf32>,
    return
  }
  func.func @transform_0(%arg0: i32) -> (i32, i32) {
    %c0_i32 = arith.constant 0 : i32
    %c0_i32_0 = arith.constant 0 : i32
    return %arg0, %c0_i32 : i32, i32
  }
  func.func @transform_1(%arg0: i32) -> (i32, i32) {
    %c0_i32 = arith.constant 0 : i32
    %c0_i32_0 = arith.constant 0 : i32
    %c0_i32_1 = arith.constant 0 : i32
    return %c0_i32, %c0_i32_0 : i32, i32
  }
  func.func @transform_2(%arg0: i32) -> (i32, i32) {
    %c0_i32 = arith.constant 0 : i32
    %c0_i32_0 = arith.constant 0 : i32
    %c0_i32_1 = arith.constant 0 : i32
    return %c0_i32, %c0_i32_0 : i32, i32
  }
  func.func @transform_3(%arg0: i32) -> (i32, i32) {
    %c0_i32 = arith.constant 0 : i32
    %c0_i32_0 = arith.constant 0 : i32
    %c0_i32_1 = arith.constant 0 : i32
    return %c0_i32, %c0_i32_0 : i32, i32
  }
  func.func @transform_4(%arg0: i32) -> (i32, i32) {
    %c0_i32 = arith.constant 0 : i32
    %c0_i32_0 = arith.constant 0 : i32
    return %arg0, %c0_i32 : i32, i32
  }
}

</mosaic_0001>

<llo_original>
// kernel: tpu_custom_call.1
$region0: #{tpu_custom_call.1}
  #allocation0 [shape = 'u32[]', space=smem, size = 0x4, offset = 0x4, fixed_abs, tag = 'smem constant byte address 0x4 - core index']
  #allocation1 [shape = 'u32[144,128]{1,0:T(1,128)}', space=vmem, size = 0x12000, scoped, tag = 'internal scratch']
  %s0 = inlined_call_operand.vmem [shape: f32[16,8], index: 0, kind: input, shape index: {}]
  %s1 = inlined_call_operand.vmem [shape: f32[8,32], index: 1, kind: input, shape index: {}]
  %s2 = inlined_call_operand.hbm [shape: f32[32,128], index: 2, kind: input, shape index: {}]
  %s3 = inlined_call_operand.vmem [shape: f32[1,32], index: 3, kind: input, shape index: {}]
  %s4 = inlined_call_operand.hbm [shape: f32[16,32], index: 4, kind: output, shape index: {}]
  %s5 = sld [smem:[#allocation0]]
  $region53: #{tpu_custom_call.1} parent=0
    _
  %s7 = ssub.s32 1, %s5
  %s8 = scalar_select 0, %s7, %s5
  $region1: #{tpu_custom_call.1} parent=0
    #allocation2 [shape = 'u8[16384]{0}', space=vmem, size = 0x4000, scoped, tag = 'input window, operand 2, single buffered']
    #allocation3 [shape = 's32[2]{0}', space=sflag, size = 0x8, scoped, tag = 'scoped memory for tpu_custom_call.1']
    #allocation4 [shape = 's32[2]{0}', space=sflag, size = 0x8, scoped, tag = 'scoped memory for tpu_custom_call.1']
    #allocation5 [shape = 'u8[8192]{0}', space=vmem, size = 0x2000, scoped, tag = 'output window, operand 0']
    %9 = vsyncpa [#allocation3], 0
    %10 = vsyncpa [#allocation4], 0
    %s11 = scalar_lea.sflag [#allocation4], 1
    %12 = vsyncpa %s11, 0
    loop: start=0, step=1, limit=4
    $region2: #{tpu_custom_call.1} parent=1 // loop_pre_header
      _
    $region3: #{tpu_custom_call.1} parent=1 // loop_header
      %s14 = sphi 0, %s18
      %p15 = scmp.ge.s32.totalorder %s14, 4
      %s24 = sphi 0, %s26
      %s27 = sphi 0, %s24
      %s28 = sphi 0, %s27
      %s44 = sphi 0, %s28
      %s48 = sphi 0, %s48
      %s50 = sphi 0, %s48
      %s51 = sphi 0, %s50
      %s65 = sphi 0, %s51
      %s69 = sphi 0, %s69
      %s71 = sphi 0, %s69
      %s72 = sphi 0, %s71
      %s86 = sphi 0, %s72
      %s90 = sphi 0, %s90
      %s92 = sphi 0, %s90
      %s93 = sphi 0, %s92
      %s107 = sphi 0, %s93
      %s113 = sphi 0, %s115
      %s116 = sphi 0, %s113
      %s117 = sphi 0, %s116
      %s133 = sphi 0, %s117
    $region4: #{tpu_custom_call.1} parent=1 // loop_header_branch
      %17 = sbr.rel (%p15) target = $region8
    $region5: #{tpu_custom_call.1} parent=1 // loop_body
      %s19 = ssub.s32 %s14, 1
      %s20 = ssub.s32 %s14, 2
      %s21 = sadd.s32 %s14, 1
      %s22 = ssub.s32 %s14, %s21
      %p23 = scmp.eq.s32.totalorder %s22, 0
      %s25 = sadd.s32 %s24, 1
      %s26 = scalar_select %p23, %s24, %s25
      %p29 = pneg %p23
      %p30 = scmp.eq.s32.totalorder %s14, 1
      %p31 = por %p29, %p30
      %p32 = scmp.ne.s32.totalorder %s24, %s27
      %p33 = scmp.eq.s32.totalorder %s14, 0
      %p34 = por %p32, %p33
      %p35 = scmp.ne.s32.totalorder %s24, %s27
      %p36 = scmp.eq.s32.totalorder %s19, 1
      %p37 = por %p35, %p36
      %p38 = scmp.ne.s32.totalorder %s27, %s28
      %p39 = scmp.eq.s32.totalorder %s19, 0
      %p40 = por %p38, %p39
      %p41 = scmp.ne.s32.totalorder %s27, %s28
      %p42 = scmp.eq.s32.totalorder %s20, 1
      %p43 = por %p41, %p42
      %p45 = scmp.ne.s32.totalorder %s28, %s44
      %p46 = scmp.eq.s32.totalorder %s20, 0
      %p47 = por %p45, %p46
      %s49 = sadd.s32 %s48, 1
      %p52 = scmp.eq.s32.totalorder %s14, 1
      %p53 = scmp.ne.s32.totalorder %s48, %s50
      %p54 = scmp.eq.s32.totalorder %s14, 0
      %p55 = por %p53, %p54
      %p56 = scmp.ne.s32.totalorder %s48, %s50
      %p57 = scmp.eq.s32.totalorder %s19, 1
      %p58 = por %p56, %p57
      %p59 = scmp.ne.s32.totalorder %s50, %s51
      %p60 = scmp.eq.s32.totalorder %s19, 0
      %p61 = por %p59, %p60
      %p62 = scmp.ne.s32.totalorder %s50, %s51
      %p63 = scmp.eq.s32.totalorder %s20, 1
      %p64 = por %p62, %p63
      %p66 = scmp.ne.s32.totalorder %s51, %s65
      %p67 = scmp.eq.s32.totalorder %s20, 0
      %p68 = por %p66, %p67
      %s70 = sadd.s32 %s69, 1
      %p73 = scmp.eq.s32.totalorder %s14, 1
      %p74 = scmp.ne.s32.totalorder %s69, %s71
      %p75 = scmp.eq.s32.totalorder %s14, 0
      %p76 = por %p74, %p75
      %p77 = scmp.ne.s32.totalorder %s69, %s71
      %p78 = scmp.eq.s32.totalorder %s19, 1
      %p79 = por %p77, %p78
      %p80 = scmp.ne.s32.totalorder %s71, %s72
      %p81 = scmp.eq.s32.totalorder %s19, 0
      %p82 = por %p80, %p81
      %p83 = scmp.ne.s32.totalorder %s71, %s72
      %p84 = scmp.eq.s32.totalorder %s20, 1
      %p85 = por %p83, %p84
      %p87 = scmp.ne.s32.totalorder %s72, %s86
      %p88 = scmp.eq.s32.totalorder %s20, 0
      %p89 = por %p87, %p88
      %s91 = sadd.s32 %s90, 1
      %p94 = scmp.eq.s32.totalorder %s14, 1
      %p95 = scmp.ne.s32.totalorder %s90, %s92
      %p96 = scmp.eq.s32.totalorder %s14, 0
      %p97 = por %p95, %p96
      %p98 = scmp.ne.s32.totalorder %s90, %s92
      %p99 = scmp.eq.s32.totalorder %s19, 1
      %p100 = por %p98, %p99
      %p101 = scmp.ne.s32.totalorder %s92, %s93
      %p102 = scmp.eq.s32.totalorder %s19, 0
      %p103 = por %p101, %p102
      %p104 = scmp.ne.s32.totalorder %s92, %s93
      %p105 = scmp.eq.s32.totalorder %s20, 1
      %p106 = por %p104, %p105
      %p108 = scmp.ne.s32.totalorder %s93, %s107
      %p109 = scmp.eq.s32.totalorder %s20, 0
      %p110 = por %p108, %p109
      %s111 = ssub.s32 %s14, %s21
      %p112 = scmp.eq.s32.totalorder %s111, 0
      %s114 = sadd.s32 %s113, 1
      %s115 = scalar_select %p112, %s113, %s114
      %p118 = pneg %p112
      %p119 = scmp.eq.s32.totalorder %s14, 1
      %p120 = por %p118, %p119
      %p121 = scmp.ne.s32.totalorder %s113, %s116
      %p122 = scmp.eq.s32.totalorder %s14, 0
      %p123 = por %p121, %p122
      %p124 = scmp.ne.s32.totalorder %s113, %s116
      %p125 = scmp.eq.s32.totalorder %s19, 1
      %p126 = por %p124, %p125
      %p127 = scmp.ne.s32.totalorder %s116, %s117
      %p128 = scmp.eq.s32.totalorder %s19, 0
      %p129 = por %p127, %p128
      %p130 = scmp.ne.s32.totalorder %s116, %s117
      %p131 = scmp.eq.s32.totalorder %s20, 1
      %p132 = por %p130, %p131
      %p134 = scmp.ne.s32.totalorder %s117, %s133
      %p135 = scmp.eq.s32.totalorder %s20, 0
      %p136 = por %p134, %p135
      %p137 = scmp.le.s32.totalorder 1, %s14
      %p138 = scmp.lt.s32.totalorder %s14, 3
      %p139 = pnand %p137, %p138
      %p140 = pneg %p139
      // Predicated region
      $region9: #{tpu_custom_call.1} parent=5 // pred_check
        _
      $region10: #{tpu_custom_call.1} parent=5 // pred_check_branch
        %142 = sbr.rel (%p139) target = $region12
      $region11: #{tpu_custom_call.1} parent=5 // pred_region
        %s143 = ssub.s32 %s14, 1
        // Predicated region
        $region13: #{tpu_custom_call.1} parent=11 // pred_check
          %p144 = pneg %p61
        $region14: #{tpu_custom_call.1} parent=11 // pred_check_branch
          %146 = sbr.rel (%p144) target = $region16
        $region15: #{tpu_custom_call.1} parent=11 // pred_region
          _
        $region16: #{tpu_custom_call.1} parent=11 // pred_fallthru
          _
        // Predicated region
        $region17: #{tpu_custom_call.1} parent=11 // pred_check
          %p147 = pneg %p82
        $region18: #{tpu_custom_call.1} parent=11 // pred_check_branch
          %149 = sbr.rel (%p147) target = $region20
        $region19: #{tpu_custom_call.1} parent=11 // pred_region
          %s151 = ssub.s32 512, 512
          %152 = vsyncadd [#allocation3], %s151
          %s153 = sshll.u32 [#allocation2], 4
          %s154 = int_to_ptr.vmem [resolvable:$true] %s153
          %159 = dma.hbm_to_vmem [thread:$0]  %s2, 512, %s154, [#allocation3], 128, 128, 8
        $region20: #{tpu_custom_call.1} parent=11 // pred_fallthru
          _
        // Predicated region
        $region21: #{tpu_custom_call.1} parent=11 // pred_check
          %p160 = pneg %p103
        $region22: #{tpu_custom_call.1} parent=11 // pred_check_branch
          %162 = sbr.rel (%p160) target = $region24
        $region23: #{tpu_custom_call.1} parent=11 // pred_region
          _
        $region24: #{tpu_custom_call.1} parent=11 // pred_fallthru
          _
      $region12: #{tpu_custom_call.1} parent=5 // pred_fallthru
        _
      %p163 = scmp.lt.s32.totalorder %s14, 2
      // Predicated region
      $region25: #{tpu_custom_call.1} parent=5 // pred_check
        %p164 = pneg %p163
      $region26: #{tpu_custom_call.1} parent=5 // pred_check_branch
        %166 = sbr.rel (%p164) target = $region28
      $region27: #{tpu_custom_call.1} parent=5 // pred_region
        // Predicated region
        $region29: #{tpu_custom_call.1} parent=27 // pred_check
          %p167 = pneg %p34
        $region30: #{tpu_custom_call.1} parent=27 // pred_check_branch
          %169 = sbr.rel (%p167) target = $region32
        $region31: #{tpu_custom_call.1} parent=27 // pred_region
          %p170 = scmp.lt.s32.totalorder %s14, 1
          %s171 = scalar_select %p170, %s14, 1
          %s172 = smul.addr %s171, 8
          %s173 = scalar_lea.vmem %s0, %s172
        $region32: #{tpu_custom_call.1} parent=27 // pred_fallthru
          _
      $region28: #{tpu_custom_call.1} parent=5 // pred_fallthru
        _
      %p174 = scmp.le.s32.totalorder 1, %s14
      %p175 = scmp.lt.s32.totalorder %s14, 3
      %p176 = pnand %p174, %p175
      %p177 = pneg %p176
      // Predicated region
      $region33: #{tpu_custom_call.1} parent=5 // pred_check
        _
      $region34: #{tpu_custom_call.1} parent=5 // pred_check_branch
        %179 = sbr.rel (%p176) target = $region36
      $region35: #{tpu_custom_call.1} parent=5 // pred_region
        %s180 = ssub.s32 %s14, 1
        // Predicated region
        $region37: #{tpu_custom_call.1} parent=35 // pred_check
          %p181 = pneg %p82
        $region38: #{tpu_custom_call.1} parent=35 // pred_check_branch
          %183 = sbr.rel (%p181) target = $region40
        $region39: #{tpu_custom_call.1} parent=35 // pred_region
          %184 = dma.done [#allocation3], 512
        $region40: #{tpu_custom_call.1} parent=35 // pred_fallthru
          _
        %p185 = scmp.lt.s32.totalorder %s19, 1
        %s186 = scalar_select %p185, %s19, 1
        %s187 = smul.addr %s186, 8
        %s188 = scalar_lea.vmem %s0, %s187
        %p189 = pneg %p40
        %p190 = pneg %p37
        %p191 = pneg %p61
        %p192 = pneg %p58
        %p193 = pneg %p82
        %p194 = pneg %p79
        %p195 = pneg %p103
        %p196 = pneg %p100
        %p197 = pneg %p129
        %p198 = pneg %p126
        %s199 = sand.u32 %s116, 1
        %s200 = scalar_lea.sflag [#allocation4], %s199
        %s201 = sand.u32 %s116, 1
        %s202 = smul.addr %s201, 8
        %s203 = scalar_lea.vmem [#allocation5], %s202
        %p204 = scmp.lt.s32.totalorder %s19, 1
        %s205 = scalar_select %p204, %s19, 1
        %s206 = smul.addr %s205, 8
        %s207 = scalar_lea.vmem %s0, %s206
        %v208 = vld [vmem:[%s1] sm:$0xff]
        %v209 = vld [vmem:[#allocation2] sm:$0xff]
        %v210 = vld [vmem:[#allocation2 + $0x8] sm:$0xff]
        %v211 = vld [vmem:[#allocation2 + $0x10] sm:$0xff]
        %v212 = vld [vmem:[#allocation2 + $0x18] sm:$0xff]
        %vm213 = vcmask 261120
        %v215 = vsel %vm213, %v208, 0
        %217 = vmatprep.subr.mxu0 0.0
        %218 = vmatpush1.msra.mxu0 0.0
        %219 = vmatprep.subr.mxu0 0.0
        %220 = vmatpush1.msra.mxu0 0.0
        %221 = vmatprep.subr.mxu0 0.0
        %222 = vmatpush1.msra.mxu0 0.0
        %223 = vmatprep.subr.mxu0 0.0
        %224 = vmatpush1.msra.mxu0 0.0
        %225 = vmatprep.subr.mxu0 0.0
        %226 = vmatpush1.msra.mxu0 0.0
        %227 = vmatprep.subr.mxu0 0.0
        %228 = vmatpush1.msra.mxu0 0.0
        %229 = vmatprep.subr.mxu0 0.0
        %230 = vmatpush1.msra.mxu0 0.0
        %231 = vmatprep.subr.mxu0 0.0
        %232 = vmatpush1.msra.mxu0 0.0
        %233 = vmatprep.subr.mxu0 0.0
        %234 = vmatpush1.msra.mxu0 0.0
        %235 = vmatprep.subr.mxu0 0.0
        %236 = vmatpush1.msra.mxu0 0.0
        %237 = vmatprep.subr.mxu0 0.0
        %238 = vmatpush1.msra.mxu0 0.0
        %239 = vmatprep.subr.mxu0 0.0
        %240 = vmatpush1.msra.mxu0 0.0
        %241 = vmatprep.subr.mxu0 0.0
        %242 = vmatpush1.msra.mxu0 %v212
        %243 = vmatprep.subr.mxu0 0.0
        %244 = vmatpush1.msra.mxu0 %v211
        %245 = vmatprep.subr.mxu0 0.0
        %246 = vmatpush1.msra.mxu0 %v210
        %247 = vmatprep.subr.mxu0 0.0
        %248 = vmatpush1.msra.mxu0 %v209
        %249 = vmatprep.subr.mxu0 0.0
        %250 = vmatpush2.msra.mxu0 0.0
        %251 = vmatprep.subr.mxu0 0.0
        %252 = vmatpush2.msra.mxu0 0.0
        %253 = vmatprep.subr.mxu0 0.0
        %254 = vmatpush2.msra.mxu0 0.0
        %255 = vmatprep.subr.mxu0 0.0
        %256 = vmatpush2.msra.mxu0 0.0
        %257 = vmatprep.subr.mxu0 0.0
        %258 = vmatpush2.msra.mxu0 0.0
        %259 = vmatprep.subr.mxu0 0.0
        %260 = vmatpush2.msra.mxu0 0.0
        %261 = vmatprep.subr.mxu0 0.0
        %262 = vmatpush2.msra.mxu0 0.0
        %263 = vmatprep.subr.mxu0 0.0
        %264 = vmatpush2.msra.mxu0 0.0
        %265 = vmatprep.subr.mxu0 0.0
        %266 = vmatpush2.msra.mxu0 0.0
        %267 = vmatprep.subr.mxu0 0.0
        %268 = vmatpush2.msra.mxu0 0.0
        %269 = vmatprep.subr.mxu0 0.0
        %270 = vmatpush2.msra.mxu0 0.0
        %271 = vmatprep.subr.mxu0 0.0
        %272 = vmatpush2.msra.mxu0 0.0
        %273 = vmatprep.subr.mxu0 0.0
        %274 = vmatpush2.msra.mxu0 0.0
        %275 = vmatprep.subr.mxu0 0.0
        %276 = vmatpush2.msra.mxu0 0.0
        %277 = vmatprep.subr.mxu0 0.0
        %278 = vmatpush2.msra.mxu0 0.0
        %279 = vmatprep.subr.mxu0 0.0
        %280 = vmatpush2.msra.mxu0 0.0
        %281 = vmatprep.mubr.f32.mxu0 0.0
        %282 = vmatmul.mubr.f32.gmra.mxu0 %v215
        %v283 = vpop.f32.mrf.mxu0
        %v284 = vadd.f32 0.0, %v283
        %v285 = vpop.f32.mrf.mxu0
        %286 = vdwg.mxu0
        %v287 = vld [vmem:[%s207] sm:$0xff]
        %vm288 = vcmask 64512
        %v290 = vsel %vm288, %v287, 0
        %292 = vmatprep.subr.mxu0 0.0
        %293 = vmatpush1.msra.mxu0 0.0
        %294 = vmatprep.subr.mxu0 0.0
        %295 = vmatpush1.msra.mxu0 0.0
        %296 = vmatprep.subr.mxu0 0.0
        %297 = vmatpush1.msra.mxu0 0.0
        %298 = vmatprep.subr.mxu0 0.0
        %299 = vmatpush1.msra.mxu0 0.0
        %300 = vmatprep.subr.mxu0 0.0
        %301 = vmatpush1.msra.mxu0 0.0
        %302 = vmatprep.subr.mxu0 0.0
        %303 = vmatpush1.msra.mxu0 0.0
        %304 = vmatprep.subr.mxu0 0.0
        %305 = vmatpush1.msra.mxu0 0.0
        %306 = vmatprep.subr.mxu0 0.0
        %307 = vmatpush1.msra.mxu0 0.0
        %308 = vmatprep.subr.mxu0 0.0
        %309 = vmatpush1.msra.mxu0 0.0
        %310 = vmatprep.subr.mxu0 0.0
        %311 = vmatpush1.msra.mxu0 0.0
        %312 = vmatprep.subr.mxu0 0.0
        %313 = vmatpush1.msra.mxu0 0.0
        %314 = vmatprep.subr.mxu0 0.0
        %315 = vmatpush1.msra.mxu0 0.0
        %316 = vmatprep.subr.mxu0 0.0
        %317 = vmatpush1.msra.mxu0 0.0
        %318 = vmatprep.subr.mxu0 0.0
        %319 = vmatpush1.msra.mxu0 0.0
        %320 = vmatprep.subr.mxu0 0.0
        %321 = vmatpush1.msra.mxu0 0.0
        %322 = vmatprep.subr.mxu0 0.0
        %323 = vmatpush1.msra.mxu0 %v284
        %324 = vmatprep.subr.mxu0 0.0
        %325 = vmatpush2.msra.mxu0 0.0
        %326 = vmatprep.subr.mxu0 0.0
        %327 = vmatpush2.msra.mxu0 0.0
        %328 = vmatprep.subr.mxu0 0.0
        %329 = vmatpush2.msra.mxu0 0.0
        %330 = vmatprep.subr.mxu0 0.0
        %331 = vmatpush2.msra.mxu0 0.0
        %332 = vmatprep.subr.mxu0 0.0
        %333 = vmatpush2.msra.mxu0 0.0
        %334 = vmatprep.subr.mxu0 0.0
        %335 = vmatpush2.msra.mxu0 0.0
        %336 = vmatprep.subr.mxu0 0.0
        %337 = vmatpush2.msra.mxu0 0.0
        %338 = vmatprep.subr.mxu0 0.0
        %339 = vmatpush2.msra.mxu0 0.0
        %340 = vmatprep.subr.mxu0 0.0
        %341 = vmatpush2.msra.mxu0 0.0
        %342 = vmatprep.subr.mxu0 0.0
        %343 = vmatpush2.msra.mxu0 0.0
        %344 = vmatprep.subr.mxu0 0.0
        %345 = vmatpush2.msra.mxu0 0.0
        %346 = vmatprep.subr.mxu0 0.0
        %347 = vmatpush2.msra.mxu0 0.0
        %348 = vmatprep.subr.mxu0 0.0
        %349 = vmatpush2.msra.mxu0 0.0
        %350 = vmatprep.subr.mxu0 0.0
        %351 = vmatpush2.msra.mxu0 0.0
        %352 = vmatprep.subr.mxu0 0.0
        %353 = vmatpush2.msra.mxu0 0.0
        %354 = vmatprep.subr.mxu0 0.0
        %355 = vmatpush2.msra.mxu0 0.0
        %356 = vmatprep.mubr.f32.mxu0 0.0
        %357 = vmatmul.mubr.f32.gmra.mxu0 %v290
        %v358 = vpop.f32.mrf.mxu0
        %v359 = vadd.f32 0.0, %v358
        %v360 = vpop.f32.mrf.mxu0
        %361 = vdwg.mxu0
        %v362 = vld [vmem:[%s3] sm:$0x1]
        %v364 = vlaneseq
        %v365 = vshrl.u32 %v364, 7
        %v366 = vsub.s32 0, %v365
        %v367 = vrot.slane %v362, %v366
        %v369 = vadd.f32 %v359, %v367
        %370 = vst.msk [vmem:[%s203] sm:$0xff] %vm213, %v369
        %s371 = sand.u32 %s116, 1
        %s372 = scalar_lea.sflag [#allocation4], %s371
        %s373 = sand.u32 %s116, 1
        %s374 = smul.addr %s373, 8
        %s375 = scalar_lea.vmem [#allocation5], %s374
        // Predicated region
        $region41: #{tpu_custom_call.1} parent=35 // pred_check
          %p376 = pneg %p126
        $region42: #{tpu_custom_call.1} parent=35 // pred_check_branch
          %378 = sbr.rel (%p376) target = $region44
        $region43: #{tpu_custom_call.1} parent=35 // pred_region
          %s380 = ssub.s32 128, 128
          %381 = vsyncadd %s372, %s380
          %s382 = smul.addr %s19, 128
          %s383 = scalar_lea.hbm %s4, %s382
          %s385 = sshll.u32 %s375, 4
          %s386 = int_to_ptr.vmem [resolvable:$true] %s385
          %388 = dma.vmem_to_hbm [thread:$0]  %s386, 128, %s383, %s372
        $region44: #{tpu_custom_call.1} parent=35 // pred_fallthru
          _
      $region36: #{tpu_custom_call.1} parent=5 // pred_fallthru
        _
      %p389 = scmp.le.s32.totalorder 2, %s14
      // Predicated region
      $region45: #{tpu_custom_call.1} parent=5 // pred_check
        %p390 = pneg %p389
      $region46: #{tpu_custom_call.1} parent=5 // pred_check_branch
        %392 = sbr.rel (%p390) target = $region48
      $region47: #{tpu_custom_call.1} parent=5 // pred_region
        %s393 = ssub.s32 %s14, 2
        // Predicated region
        $region49: #{tpu_custom_call.1} parent=47 // pred_check
          %p394 = pneg %p132
        $region50: #{tpu_custom_call.1} parent=47 // pred_check_branch
          %396 = sbr.rel (%p394) target = $region52
        $region51: #{tpu_custom_call.1} parent=47 // pred_region
          %s397 = sand.u32 %s117, 1
          %s398 = scalar_lea.sflag [#allocation4], %s397
          %s399 = sand.u32 %s117, 1
          %s400 = smul.addr %s399, 8
          %s401 = scalar_lea.vmem [#allocation5], %s400
          %402 = dma.done %s398, 128
        $region52: #{tpu_custom_call.1} parent=47 // pred_fallthru
          _
      $region48: #{tpu_custom_call.1} parent=5 // pred_fallthru
        _
    $region6: #{tpu_custom_call.1} parent=1 // loop_footer
      %s18 = sadd.s32 1, %s14
    $region7: #{tpu_custom_call.1} parent=1 // loop_footer_branch
      %13 = sbr.rel target = $region3
    $region8: #{tpu_custom_call.1} parent=1 // loop_exit
      _
    %403 = vsyncpa [#allocation3], 1
    %s404 = scalar_lea.sflag [#allocation3], 1
    %405 = vsyncpa %s404, 1
    %406 = vsyncpa [#allocation4], 1
    %s407 = scalar_lea.sflag [#allocation4], 1
    %408 = vsyncpa %s407, 1

// kernel: tpu_custom_call.1
$region0: #{tpu_custom_call.1}
  #allocation0 [shape = 'u32[]', space=smem, size = 0x4, offset = 0x4, fixed_abs, tag = 'smem constant byte address 0x4 - core index']
  #allocation1 [shape = 'u32[144,128]{1,0:T(1,128)}', space=vmem, size = 0x12000, scoped, tag = 'internal scratch']
  %s0 = inlined_call_operand.vmem [shape: f32[16,8], index: 0, kind: input, shape index: {}]
  %s1 = inlined_call_operand.vmem [shape: f32[8,32], index: 1, kind: input, shape index: {}]
  %s2 = inlined_call_operand.hbm [shape: f32[32,128], index: 2, kind: input, shape index: {}]
  %s3 = inlined_call_operand.vmem [shape: f32[1,32], index: 3, kind: input, shape index: {}]
  %s4 = inlined_call_operand.hbm [shape: f32[16,32], index: 4, kind: output, shape index: {}]
  %s5 = sld [smem:[#allocation0]]
  $region53: #{tpu_custom_call.1} parent=0
    _
  %s7 = ssub.s32 1, %s5
  %s8 = scalar_select 0, %s7, %s5
  $region1: #{tpu_custom_call.1} parent=0
    #allocation2 [shape = 'u8[16384]{0}', space=vmem, size = 0x4000, scoped, tag = 'input window, operand 2, single buffered']
    #allocation3 [shape = 's32[2]{0}', space=sflag, size = 0x8, scoped, tag = 'scoped memory for tpu_custom_call.1']
    #allocation4 [shape = 's32[2]{0}', space=sflag, size = 0x8, scoped, tag = 'scoped memory for tpu_custom_call.1']
    #allocation5 [shape = 'u8[8192]{0}', space=vmem, size = 0x2000, scoped, tag = 'output window, operand 0']
    %9 = vsyncpa [#allocation3], 0
    %10 = vsyncpa [#allocation4], 0
    %s11 = scalar_lea.sflag [#allocation4], 1
    %12 = vsyncpa %s11, 0
    loop: start=0, step=1, limit=4
    $region2: #{tpu_custom_call.1} parent=1 // loop_pre_header
      _
    $region3: #{tpu_custom_call.1} parent=1 // loop_header
      %s14 = sphi 0, %s18
      %p15 = scmp.ge.s32.totalorder %s14, 4
      %s24 = sphi 0, %s26
      %s27 = sphi 0, %s24
      %s28 = sphi 0, %s27
      %s44 = sphi 0, %s28
      %s48 = sphi 0, %s48
      %s50 = sphi 0, %s48
      %s51 = sphi 0, %s50
      %s65 = sphi 0, %s51
      %s69 = sphi 0, %s69
      %s71 = sphi 0, %s69
      %s72 = sphi 0, %s71
      %s86 = sphi 0, %s72
      %s90 = sphi 0, %s90
      %s92 = sphi 0, %s90
      %s93 = sphi 0, %s92
      %s107 = sphi 0, %s93
      %s113 = sphi 0, %s115
      %s116 = sphi 0, %s113
      %s117 = sphi 0, %s116
      %s133 = sphi 0, %s117
    $region4: #{tpu_custom_call.1} parent=1 // loop_header_branch
      %17 = sbr.rel (%p15) target = $region8
    $region5: #{tpu_custom_call.1} parent=1 // loop_body
      %s19 = ssub.s32 %s14, 1
      %s20 = ssub.s32 %s14, 2
      %s21 = sadd.s32 %s14, 1
      %s22 = ssub.s32 %s14, %s21
      %p23 = scmp.eq.s32.totalorder %s22, 0
      %s25 = sadd.s32 %s24, 1
      %s26 = scalar_select %p23, %s24, %s25
      %p29 = pneg %p23
      %p30 = scmp.eq.s32.totalorder %s14, 1
      %p31 = por %p29, %p30
      %p32 = scmp.ne.s32.totalorder %s24, %s27
      %p33 = scmp.eq.s32.totalorder %s14, 0
      %p34 = por %p32, %p33
      %p35 = scmp.ne.s32.totalorder %s24, %s27
      %p36 = scmp.eq.s32.totalorder %s19, 1
      %p37 = por %p35, %p36
      %p38 = scmp.ne.s32.totalorder %s27, %s28
      %p39 = scmp.eq.s32.totalorder %s19, 0
      %p40 = por %p38, %p39
      %p41 = scmp.ne.s32.totalorder %s27, %s28
      %p42 = scmp.eq.s32.totalorder %s20, 1
      %p43 = por %p41, %p42
      %p45 = scmp.ne.s32.totalorder %s28, %s44
      %p46 = scmp.eq.s32.totalorder %s20, 0
      %p47 = por %p45, %p46
      %s49 = sadd.s32 %s48, 1
      %p52 = scmp.eq.s32.totalorder %s14, 1
      %p53 = scmp.ne.s32.totalorder %s48, %s50
      %p54 = scmp.eq.s32.totalorder %s14, 0
      %p55 = por %p53, %p54
      %p56 = scmp.ne.s32.totalorder %s48, %s50
      %p57 = scmp.eq.s32.totalorder %s19, 1
      %p58 = por %p56, %p57
      %p59 = scmp.ne.s32.totalorder %s50, %s51
      %p60 = scmp.eq.s32.totalorder %s19, 0
      %p61 = por %p59, %p60
      %p62 = scmp.ne.s32.totalorder %s50, %s51
      %p63 = scmp.eq.s32.totalorder %s20, 1
      %p64 = por %p62, %p63
      %p66 = scmp.ne.s32.totalorder %s51, %s65
      %p67 = scmp.eq.s32.totalorder %s20, 0
      %p68 = por %p66, %p67
      %s70 = sadd.s32 %s69, 1
      %p73 = scmp.eq.s32.totalorder %s14, 1
      %p74 = scmp.ne.s32.totalorder %s69, %s71
      %p75 = scmp.eq.s32.totalorder %s14, 0
      %p76 = por %p74, %p75
      %p77 = scmp.ne.s32.totalorder %s69, %s71
      %p78 = scmp.eq.s32.totalorder %s19, 1
      %p79 = por %p77, %p78
      %p80 = scmp.ne.s32.totalorder %s71, %s72
      %p81 = scmp.eq.s32.totalorder %s19, 0
      %p82 = por %p80, %p81
      %p83 = scmp.ne.s32.totalorder %s71, %s72
      %p84 = scmp.eq.s32.totalorder %s20, 1
      %p85 = por %p83, %p84
      %p87 = scmp.ne.s32.totalorder %s72, %s86
      %p88 = scmp.eq.s32.totalorder %s20, 0
      %p89 = por %p87, %p88
      %s91 = sadd.s32 %s90, 1
      %p94 = scmp.eq.s32.totalorder %s14, 1
      %p95 = scmp.ne.s32.totalorder %s90, %s92
      %p96 = scmp.eq.s32.totalorder %s14, 0
      %p97 = por %p95, %p96
      %p98 = scmp.ne.s32.totalorder %s90, %s92
      %p99 = scmp.eq.s32.totalorder %s19, 1
      %p100 = por %p98, %p99
      %p101 = scmp.ne.s32.totalorder %s92, %s93
      %p102 = scmp.eq.s32.totalorder %s19, 0
      %p103 = por %p101, %p102
      %p104 = scmp.ne.s32.totalorder %s92, %s93
      %p105 = scmp.eq.s32.totalorder %s20, 1
      %p106 = por %p104, %p105
      %p108 = scmp.ne.s32.totalorder %s93, %s107
      %p109 = scmp.eq.s32.totalorder %s20, 0
      %p110 = por %p108, %p109
      %s111 = ssub.s32 %s14, %s21
      %p112 = scmp.eq.s32.totalorder %s111, 0
      %s114 = sadd.s32 %s113, 1
      %s115 = scalar_select %p112, %s113, %s114
      %p118 = pneg %p112
      %p119 = scmp.eq.s32.totalorder %s14, 1
      %p120 = por %p118, %p119
      %p121 = scmp.ne.s32.totalorder %s113, %s116
      %p122 = scmp.eq.s32.totalorder %s14, 0
      %p123 = por %p121, %p122
      %p124 = scmp.ne.s32.totalorder %s113, %s116
      %p125 = scmp.eq.s32.totalorder %s19, 1
      %p126 = por %p124, %p125
      %p127 = scmp.ne.s32.totalorder %s116, %s117
      %p128 = scmp.eq.s32.totalorder %s19, 0
      %p129 = por %p127, %p128
      %p130 = scmp.ne.s32.totalorder %s116, %s117
      %p131 = scmp.eq.s32.totalorder %s20, 1
      %p132 = por %p130, %p131
      %p134 = scmp.ne.s32.totalorder %s117, %s133
      %p135 = scmp.eq.s32.totalorder %s20, 0
      %p136 = por %p134, %p135
      %p137 = scmp.le.s32.totalorder 1, %s14
      %p138 = scmp.lt.s32.totalorder %s14, 3
      %p139 = pnand %p137, %p138
      %p140 = pneg %p139
      // Predicated region
      $region9: #{tpu_custom_call.1} parent=5 // pred_check
        _
      $region10: #{tpu_custom_call.1} parent=5 // pred_check_branch
        %142 = sbr.rel (%p139) target = $region12
      $region11: #{tpu_custom_call.1} parent=5 // pred_region
        %s143 = ssub.s32 %s14, 1
        // Predicated region
        $region13: #{tpu_custom_call.1} parent=11 // pred_check
          %p144 = pneg %p61
        $region14: #{tpu_custom_call.1} parent=11 // pred_check_branch
          %146 = sbr.rel (%p144) target = $region16
        $region15: #{tpu_custom_call.1} parent=11 // pred_region
          _
        $region16: #{tpu_custom_call.1} parent=11 // pred_fallthru
          _
        // Predicated region
        $region17: #{tpu_custom_call.1} parent=11 // pred_check
          %p147 = pneg %p82
        $region18: #{tpu_custom_call.1} parent=11 // pred_check_branch
          %149 = sbr.rel (%p147) target = $region20
        $region19: #{tpu_custom_call.1} parent=11 // pred_region
          %s151 = ssub.s32 512, 512
          %152 = vsyncadd [#allocation3], %s151
          %s153 = sshll.u32 [#allocation2], 4
          %s154 = int_to_ptr.vmem [resolvable:$true] %s153
          %159 = dma.hbm_to_vmem [thread:$0]  %s2, 512, %s154, [#allocation3], 128, 128, 8
        $region20: #{tpu_custom_call.1} parent=11 // pred_fallthru
          _
        // Predicated region
        $region21: #{tpu_custom_call.1} parent=11 // pred_check
          %p160 = pneg %p103
        $region22: #{tpu_custom_call.1} parent=11 // pred_check_branch
          %162 = sbr.rel (%p160) target = $region24
        $region23: #{tpu_custom_call.1} parent=11 // pred_region
          _
        $region24: #{tpu_custom_call.1} parent=11 // pred_fallthru
          _
      $region12: #{tpu_custom_call.1} parent=5 // pred_fallthru
        _
      %p163 = scmp.lt.s32.totalorder %s14, 2
      // Predicated region
      $region25: #{tpu_custom_call.1} parent=5 // pred_check
        %p164 = pneg %p163
      $region26: #{tpu_custom_call.1} parent=5 // pred_check_branch
        %166 = sbr.rel (%p164) target = $region28
      $region27: #{tpu_custom_call.1} parent=5 // pred_region
        // Predicated region
        $region29: #{tpu_custom_call.1} parent=27 // pred_check
          %p167 = pneg %p34
        $region30: #{tpu_custom_call.1} parent=27 // pred_check_branch
          %169 = sbr.rel (%p167) target = $region32
        $region31: #{tpu_custom_call.1} parent=27 // pred_region
          %p170 = scmp.lt.s32.totalorder %s14, 1
          %s171 = scalar_select %p170, %s14, 1
          %s172 = smul.addr %s171, 8
          %s173 = scalar_lea.vmem %s0, %s172
        $region32: #{tpu_custom_call.1} parent=27 // pred_fallthru
          _
      $region28: #{tpu_custom_call.1} parent=5 // pred_fallthru
        _
      %p174 = scmp.le.s32.totalorder 1, %s14
      %p175 = scmp.lt.s32.totalorder %s14, 3
      %p176 = pnand %p174, %p175
      %p177 = pneg %p176
      // Predicated region
      $region33: #{tpu_custom_call.1} parent=5 // pred_check
        _
      $region34: #{tpu_custom_call.1} parent=5 // pred_check_branch
        %179 = sbr.rel (%p176) target = $region36
      $region35: #{tpu_custom_call.1} parent=5 // pred_region
        %s180 = ssub.s32 %s14, 1
        // Predicated region
        $region37: #{tpu_custom_call.1} parent=35 // pred_check
          %p181 = pneg %p82
        $region38: #{tpu_custom_call.1} parent=35 // pred_check_branch
          %183 = sbr.rel (%p181) target = $region40
        $region39: #{tpu_custom_call.1} parent=35 // pred_region
          %184 = dma.done [#allocation3], 512
        $region40: #{tpu_custom_call.1} parent=35 // pred_fallthru
          _
        %p185 = scmp.lt.s32.totalorder %s19, 1
        %s186 = scalar_select %p185, %s19, 1
        %s187 = smul.addr %s186, 8
        %s188 = scalar_lea.vmem %s0, %s187
        %p189 = pneg %p40
        %p190 = pneg %p37
        %p191 = pneg %p61
        %p192 = pneg %p58
        %p193 = pneg %p82
        %p194 = pneg %p79
        %p195 = pneg %p103
        %p196 = pneg %p100
        %p197 = pneg %p129
        %p198 = pneg %p126
        %s199 = sand.u32 %s116, 1
        %s200 = scalar_lea.sflag [#allocation4], %s199
        %s201 = sand.u32 %s116, 1
        %s202 = smul.addr %s201, 8
        %s203 = scalar_lea.vmem [#allocation5], %s202
        %p204 = scmp.lt.s32.totalorder %s19, 1
        %s205 = scalar_select %p204, %s19, 1
        %s206 = smul.addr %s205, 8
        %s207 = scalar_lea.vmem %s0, %s206
        %v208 = vld [vmem:[%s1] sm:$0xff]
        %v209 = vld [vmem:[#allocation2] sm:$0xff]
        %v210 = vld [vmem:[#allocation2 + $0x8] sm:$0xff]
        %v211 = vld [vmem:[#allocation2 + $0x10] sm:$0xff]
        %v212 = vld [vmem:[#allocation2 + $0x18] sm:$0xff]
        %vm213 = vcmask 261120
        %v215 = vsel %vm213, %v208, 0
        %217 = vmatprep.subr.mxu0 0.0
        %218 = vmatpush1.msra.mxu0 0.0
        %219 = vmatprep.subr.mxu0 0.0
        %220 = vmatpush1.msra.mxu0 0.0
        %221 = vmatprep.subr.mxu0 0.0
        %222 = vmatpush1.msra.mxu0 0.0
        %223 = vmatprep.subr.mxu0 0.0
        %224 = vmatpush1.msra.mxu0 0.0
        %225 = vmatprep.subr.mxu0 0.0
        %226 = vmatpush1.msra.mxu0 0.0
        %227 = vmatprep.subr.mxu0 0.0
        %228 = vmatpush1.msra.mxu0 0.0
        %229 = vmatprep.subr.mxu0 0.0
        %230 = vmatpush1.msra.mxu0 0.0
        %231 = vmatprep.subr.mxu0 0.0
        %232 = vmatpush1.msra.mxu0 0.0
        %233 = vmatprep.subr.mxu0 0.0
        %234 = vmatpush1.msra.mxu0 0.0
        %235 = vmatprep.subr.mxu0 0.0
        %236 = vmatpush1.msra.mxu0 0.0
        %237 = vmatprep.subr.mxu0 0.0
        %238 = vmatpush1.msra.mxu0 0.0
        %239 = vmatprep.subr.mxu0 0.0
        %240 = vmatpush1.msra.mxu0 0.0
        %241 = vmatprep.subr.mxu0 0.0
        %242 = vmatpush1.msra.mxu0 %v212
        %243 = vmatprep.subr.mxu0 0.0
        %244 = vmatpush1.msra.mxu0 %v211
        %245 = vmatprep.subr.mxu0 0.0
        %246 = vmatpush1.msra.mxu0 %v210
        %247 = vmatprep.subr.mxu0 0.0
        %248 = vmatpush1.msra.mxu0 %v209
        %249 = vmatprep.subr.mxu0 0.0
        %250 = vmatpush2.msra.mxu0 0.0
        %251 = vmatprep.subr.mxu0 0.0
        %252 = vmatpush2.msra.mxu0 0.0
        %253 = vmatprep.subr.mxu0 0.0
        %254 = vmatpush2.msra.mxu0 0.0
        %255 = vmatprep.subr.mxu0 0.0
        %256 = vmatpush2.msra.mxu0 0.0
        %257 = vmatprep.subr.mxu0 0.0
        %258 = vmatpush2.msra.mxu0 0.0
        %259 = vmatprep.subr.mxu0 0.0
        %260 = vmatpush2.msra.mxu0 0.0
        %261 = vmatprep.subr.mxu0 0.0
        %262 = vmatpush2.msra.mxu0 0.0
        %263 = vmatprep.subr.mxu0 0.0
        %264 = vmatpush2.msra.mxu0 0.0
        %265 = vmatprep.subr.mxu0 0.0
        %266 = vmatpush2.msra.mxu0 0.0
        %267 = vmatprep.subr.mxu0 0.0
        %268 = vmatpush2.msra.mxu0 0.0
        %269 = vmatprep.subr.mxu0 0.0
        %270 = vmatpush2.msra.mxu0 0.0
        %271 = vmatprep.subr.mxu0 0.0
        %272 = vmatpush2.msra.mxu0 0.0
        %273 = vmatprep.subr.mxu0 0.0
        %274 = vmatpush2.msra.mxu0 0.0
        %275 = vmatprep.subr.mxu0 0.0
        %276 = vmatpush2.msra.mxu0 0.0
        %277 = vmatprep.subr.mxu0 0.0
        %278 = vmatpush2.msra.mxu0 0.0
        %279 = vmatprep.subr.mxu0 0.0
        %280 = vmatpush2.msra.mxu0 0.0
        %281 = vmatprep.mubr.f32.mxu0 0.0
        %282 = vmatmul.mubr.f32.gmra.mxu0 %v215
        %v283 = vpop.f32.mrf.mxu0
        %v284 = vadd.f32 0.0, %v283
        %v285 = vpop.f32.mrf.mxu0
        %286 = vdwg.mxu0
        %v287 = vld [vmem:[%s207] sm:$0xff]
        %vm288 = vcmask 64512
        %v290 = vsel %vm288, %v287, 0
        %292 = vmatprep.subr.mxu0 0.0
        %293 = vmatpush1.msra.mxu0 0.0
        %294 = vmatprep.subr.mxu0 0.0
        %295 = vmatpush1.msra.mxu0 0.0
        %296 = vmatprep.subr.mxu0 0.0
        %297 = vmatpush1.msra.mxu0 0.0
        %298 = vmatprep.subr.mxu0 0.0
        %299 = vmatpush1.msra.mxu0 0.0
        %300 = vmatprep.subr.mxu0 0.0
        %301 = vmatpush1.msra.mxu0 0.0
        %302 = vmatprep.subr.mxu0 0.0
        %303 = vmatpush1.msra.mxu0 0.0
        %304 = vmatprep.subr.mxu0 0.0
        %305 = vmatpush1.msra.mxu0 0.0
        %306 = vmatprep.subr.mxu0 0.0
        %307 = vmatpush1.msra.mxu0 0.0
        %308 = vmatprep.subr.mxu0 0.0
        %309 = vmatpush1.msra.mxu0 0.0
        %310 = vmatprep.subr.mxu0 0.0
        %311 = vmatpush1.msra.mxu0 0.0
        %312 = vmatprep.subr.mxu0 0.0
        %313 = vmatpush1.msra.mxu0 0.0
        %314 = vmatprep.subr.mxu0 0.0
        %315 = vmatpush1.msra.mxu0 0.0
        %316 = vmatprep.subr.mxu0 0.0
        %317 = vmatpush1.msra.mxu0 0.0
        %318 = vmatprep.subr.mxu0 0.0
        %319 = vmatpush1.msra.mxu0 0.0
        %320 = vmatprep.subr.mxu0 0.0
        %321 = vmatpush1.msra.mxu0 0.0
        %322 = vmatprep.subr.mxu0 0.0
        %323 = vmatpush1.msra.mxu0 %v284
        %324 = vmatprep.subr.mxu0 0.0
        %325 = vmatpush2.msra.mxu0 0.0
        %326 = vmatprep.subr.mxu0 0.0
        %327 = vmatpush2.msra.mxu0 0.0
        %328 = vmatprep.subr.mxu0 0.0
        %329 = vmatpush2.msra.mxu0 0.0
        %330 = vmatprep.subr.mxu0 0.0
        %331 = vmatpush2.msra.mxu0 0.0
        %332 = vmatprep.subr.mxu0 0.0
        %333 = vmatpush2.msra.mxu0 0.0
        %334 = vmatprep.subr.mxu0 0.0
        %335 = vmatpush2.msra.mxu0 0.0
        %336 = vmatprep.subr.mxu0 0.0
        %337 = vmatpush2.msra.mxu0 0.0
        %338 = vmatprep.subr.mxu0 0.0
        %339 = vmatpush2.msra.mxu0 0.0
        %340 = vmatprep.subr.mxu0 0.0
        %341 = vmatpush2.msra.mxu0 0.0
        %342 = vmatprep.subr.mxu0 0.0
        %343 = vmatpush2.msra.mxu0 0.0
        %344 = vmatprep.subr.mxu0 0.0
        %345 = vmatpush2.msra.mxu0 0.0
        %346 = vmatprep.subr.mxu0 0.0
        %347 = vmatpush2.msra.mxu0 0.0
        %348 = vmatprep.subr.mxu0 0.0
        %349 = vmatpush2.msra.mxu0 0.0
        %350 = vmatprep.subr.mxu0 0.0
        %351 = vmatpush2.msra.mxu0 0.0
        %352 = vmatprep.subr.mxu0 0.0
        %353 = vmatpush2.msra.mxu0 0.0
        %354 = vmatprep.subr.mxu0 0.0
        %355 = vmatpush2.msra.mxu0 0.0
        %356 = vmatprep.mubr.f32.mxu0 0.0
        %357 = vmatmul.mubr.f32.gmra.mxu0 %v290
        %v358 = vpop.f32.mrf.mxu0
        %v359 = vadd.f32 0.0, %v358
        %v360 = vpop.f32.mrf.mxu0
        %361 = vdwg.mxu0
        %v362 = vld [vmem:[%s3] sm:$0x1]
        %v364 = vlaneseq
        %v365 = vshrl.u32 %v364, 7
        %v366 = vsub.s32 0, %v365
        %v367 = vrot.slane %v362, %v366
        %v369 = vadd.f32 %v359, %v367
        %370 = vst.msk [vmem:[%s203] sm:$0xff] %vm213, %v369
        %s371 = sand.u32 %s116, 1
        %s372 = scalar_lea.sflag [#allocation4], %s371
        %s373 = sand.u32 %s116, 1
        %s374 = smul.addr %s373, 8
        %s375 = scalar_lea.vmem [#allocation5], %s374
        // Predicated region
        $region41: #{tpu_custom_call.1} parent=35 // pred_check
          %p376 = pneg %p126
        $region42: #{tpu_custom_call.1} parent=35 // pred_check_branch
          %378 = sbr.rel (%p376) target = $region44
        $region43: #{tpu_custom_call.1} parent=35 // pred_region
          %s380 = ssub.s32 128, 128
          %381 = vsyncadd %s372, %s380
          %s382 = smul.addr %s19, 128
          %s383 = scalar_lea.hbm %s4, %s382
          %s385 = sshll.u32 %s375, 4
          %s386 = int_to_ptr.vmem [resolvable:$true] %s385
          %388 = dma.vmem_to_hbm [thread:$0]  %s386, 128, %s383, %s372
        $region44: #{tpu_custom_call.1} parent=35 // pred_fallthru
          _
      $region36: #{tpu_custom_call.1} parent=5 // pred_fallthru
        _
      %p389 = scmp.le.s32.totalorder 2, %s14
      // Predicated region
      $region45: #{tpu_custom_call.1} parent=5 // pred_check
        %p390 = pneg %p389
      $region46: #{tpu_custom_call.1} parent=5 // pred_check_branch
        %392 = sbr.rel (%p390) target = $region48
      $region47: #{tpu_custom_call.1} parent=5 // pred_region
        %s393 = ssub.s32 %s14, 2
        // Predicated region
        $region49: #{tpu_custom_call.1} parent=47 // pred_check
          %p394 = pneg %p132
        $region50: #{tpu_custom_call.1} parent=47 // pred_check_branch
          %396 = sbr.rel (%p394) target = $region52
        $region51: #{tpu_custom_call.1} parent=47 // pred_region
          %s397 = sand.u32 %s117, 1
          %s398 = scalar_lea.sflag [#allocation4], %s397
          %s399 = sand.u32 %s117, 1
          %s400 = smul.addr %s399, 8
          %s401 = scalar_lea.vmem [#allocation5], %s400
          %402 = dma.done %s398, 128
        $region52: #{tpu_custom_call.1} parent=47 // pred_fallthru
          _
      $region48: #{tpu_custom_call.1} parent=5 // pred_fallthru
        _
    $region6: #{tpu_custom_call.1} parent=1 // loop_footer
      %s18 = sadd.s32 1, %s14
    $region7: #{tpu_custom_call.1} parent=1 // loop_footer_branch
      %13 = sbr.rel target = $region3
    $region8: #{tpu_custom_call.1} parent=1 // loop_exit
      _
    %403 = vsyncpa [#allocation3], 1
    %s404 = scalar_lea.sflag [#allocation3], 1
    %405 = vsyncpa %s404, 1
    %406 = vsyncpa [#allocation4], 1
    %s407 = scalar_lea.sflag [#allocation4], 1
    %408 = vsyncpa %s407, 1

</llo_original>
